<compile_context>
chip_gen: v5e
topology: v5e:2x2
jax: 0.10.0
libtpu: 0.0.40
codegen_flags: <defaults>
</compile_context>

<pallas_src>
import functools

import jax
import jax.numpy as jnp
from jax.experimental import pallas as pl
from jax.experimental.pallas import tpu as pltpu


def _nll_kernel(inp_ref, tgt_ref, out_ref, picked_acc, *,
                seq_len, block_t, block_c, t_blocks_per_core, ignore_index):
    p = pl.program_id(0)          # TensorCore split of the time-block axis
    t = pl.program_id(1)          # time block within this core's share
    c = pl.program_id(2)          # class chunk (innermost)
    nc = pl.num_programs(2)

    # Zero this core's resident output partial on its first grid step.
    @pl.when((t == 0) & (c == 0))
    def _():
        out_ref[...] = jnp.zeros_like(out_ref)

    # Zero the per-time-block gather accumulator at the first class chunk.
    @pl.when(c == 0)
    def _():
        picked_acc[...] = jnp.zeros_like(picked_acc)

    # Stream the log-prob tile; upcast bf16 -> f32 here (v5e VPU has no bf16).
    logp = inp_ref[...].astype(jnp.float32)          # (block_t, B, block_c)
    tgt = tgt_ref[...]                               # (block_t, B) int32

    # Partial gather of logp[t, b, tgt[t, b]] over this class chunk via
    # one-hot compare + lane reduce.  Exact across chunks (disjoint hits sum).
    # Padded tail lanes of the last C-chunk have class_ids >= C, which never
    # match a valid target, so unspecified padded logp is never selected.
    class_ids = c * block_c + jax.lax.broadcasted_iota(
        jnp.int32, (1, 1, block_c), 2)
    onehot = class_ids == tgt[:, :, None]            # (block_t, B, block_c)
    picked_acc[...] += jnp.sum(jnp.where(onehot, logp, 0.0), axis=2)

    # Finalize this time block once all class chunks have been accumulated.
    @pl.when(c == nc - 1)
    def _():
        # Global time indices of this block's rows: masks both the
        # T % block_t tail and phantom blocks from the 2-core split.
        g0 = (p * t_blocks_per_core + t) * block_t
        t_idx = g0 + jax.lax.broadcasted_iota(jnp.int32, (block_t, 1), 0)
        valid = t_idx < seq_len                      # (block_t, 1) bool
        picked = picked_acc[...]                     # (block_t, B)

        if ignore_index is not None:
            keep = tgt != ignore_index               # (block_t, B) bool
            numer = jnp.sum(jnp.where(keep, -picked, 0.0), axis=1, keepdims=True)
            denom = jnp.sum(jnp.where(keep, 1.0, 0.0), axis=1, keepdims=True)
            # Valid step with all targets ignored -> 0/0 -> NaN (matches torch).
            step_loss = jnp.where(valid, numer / denom, 0.0)   # (block_t, 1)
            block_loss = jnp.sum(step_loss)
        else:
            # reduction='mean' per step == global sum * (1/B); the 1/B scale
            # is applied once in the wrapper.
            block_loss = jnp.sum(jnp.where(valid, -picked, 0.0))

        out_ref[...] += block_loss                   # scalar broadcast add


def _choose_tiles(T, B, C, elem_bytes, target_bytes=4 << 20):
    """Pick (block_t, block_c) so the inp tile is ~target_bytes (~2x buffered)."""
    min_bt = T if T <= 8 else 8
    full_row = B * C * elem_bytes
    if min_bt * full_row > target_bytes and C > 128:
        # Wide-C regime: chunk the class axis (block_c must be a 128-multiple).
        block_t = min_bt
        bc = target_bytes // max(1, block_t * B * elem_bytes)
        bc = (bc // 128) * 128
        block_c = int(max(128, min(bc, (C // 128) * 128)))
    else:
        block_c = C
        bt = target_bytes // max(1, full_row)
        if bt >= T:
            block_t = T
        else:
            block_t = int(max(min_bt, (bt // 8) * 8))
            if block_t >= T:
                block_t = T
    return int(block_t), int(block_c)


def custom_nll_loss(inp, target, ignore_index=None, block_t=None, block_c=None,
                    target_tile_bytes=4 << 20):
    """inp: (T, B, C) float32/bf16 log-probs; target: (B, T) int. Scalar loss."""
    # Mimic the PyTorch module's `if self.ignore_index:` (falsy => plain NLLLoss).
    # NOTE: ignore_index=0 is therefore silently treated as "no ignore".
    if not ignore_index:
        ignore_index = None

    if inp.dtype not in (jnp.float32, jnp.bfloat16):
        inp = inp.astype(jnp.float32)
    T, B, C = inp.shape
    # Transpose targets to (T, B) so they tile in lockstep with inp.
    tgt_t = jnp.transpose(target.astype(jnp.int32))          # (T, B)

    auto_bt, auto_bc = _choose_tiles(T, B, C, jnp.dtype(inp.dtype).itemsize,
                                     target_tile_bytes)
    block_t = int(block_t) if block_t is not None else auto_bt
    block_c = int(block_c) if block_c is not None else auto_bc
    if block_t != T:
        assert block_t % 8 == 0 and 0 < block_t < T, (block_t, T)
    if block_c != C:
        assert block_c % 128 == 0 and 0 < block_c < C, (block_c, C)

    t_blocks = pl.cdiv(T, block_t)
    c_blocks = pl.cdiv(C, block_c)
    # Split the time-block axis across the (up to) 2 TensorCores of a v7x chip;
    # on v5e/v6e (1 TC) the extra "parallel" axis is a harmless serial loop.
    n_cores = 2 if t_blocks >= 2 else 1
    tpc = pl.cdiv(t_blocks, n_cores)          # time blocks per core

    def inp_index(p, t, c):
        # Clamp phantom block indices (when t_blocks % n_cores != 0); their
        # contribution is fully masked out in-kernel via the valid-time mask.
        return (jnp.minimum(p * tpc + t, t_blocks - 1), 0, c)

    def tgt_index(p, t, c):
        return (jnp.minimum(p * tpc + t, t_blocks - 1), 0)

    kernel = functools.partial(
        _nll_kernel,
        seq_len=T,
        block_t=block_t,
        block_c=block_c,
        t_blocks_per_core=tpc,
        ignore_index=ignore_index,
    )

    out = pl.pallas_call(
        kernel,
        # One (8,128) partial tile per core (keeps the output block (8,128)
        # aligned); element [p,0,0] carries core p's partial sum.
        out_shape=jax.ShapeDtypeStruct((n_cores, 8, 128), jnp.float32),
        grid_spec=pltpu.PrefetchScalarGridSpec(
            num_scalar_prefetch=0,
            grid=(n_cores, tpc, c_blocks),
            in_specs=[
                pl.BlockSpec((block_t, B, block_c), inp_index),
                pl.BlockSpec((block_t, B), tgt_index),
            ],
            out_specs=pl.BlockSpec((1, 8, 128), lambda p, t, c: (p, 0, 0)),
            scratch_shapes=[pltpu.VMEM((block_t, B), jnp.float32)],
        ),
        compiler_params=pltpu.CompilerParams(
            dimension_semantics=("parallel", "arbitrary", "arbitrary"),
            vmem_limit_bytes=48 * 1024 * 1024,
        ),
    )(inp, tgt_t)

    total = jnp.sum(out[:, 0, 0])
    if ignore_index is None:
        total = total / jnp.float32(B)
    return total


def _reference_loss(inp, target, ignore_index=None):
    """Pure-JAX reimplementation of the PyTorch forward (for verification)."""
    if not ignore_index:
        ignore_index = None
    inp = inp.astype(jnp.float32)
    T, B, C = inp.shape
    loss = jnp.float32(0.0)
    for i in range(T):
        logp = inp[i]
        t = target[:, i]
        picked = jnp.take_along_axis(logp, t[:, None], axis=1)[:, 0]
        if ignore_index is not None:
            keep = (t != ignore_index).astype(jnp.float32)
            loss = loss + jnp.sum(-picked * keep) / jnp.sum(keep)
        else:
            loss = loss + jnp.mean(-picked)
    return loss


if __name__ == "__main__":
    key = jax.random.PRNGKey(0)
    k1, k2, k3, k4, k5, k6 = jax.random.split(key, 6)

    # Case 1: T=8, B=4, C=32 (single block), plain NLLLoss.
    T, B, C = 8, 4, 32
    logits = jax.random.normal(k1, (T, B, C), dtype=jnp.float32)
    log_probs = jax.nn.log_softmax(logits, axis=-1)
    target = jax.random.randint(k2, (B, T), 0, C, dtype=jnp.int32)

    loss = jax.block_until_ready(custom_nll_loss(log_probs, target))
    ref = _reference_loss(log_probs, target)
    assert jnp.allclose(loss, ref, rtol=1e-5, atol=1e-5), (loss, ref)

    # Case 2: ignore_index path.
    loss_ig = jax.block_until_ready(custom_nll_loss(log_probs, target, ignore_index=3))
    ref_ig = _reference_loss(log_probs, target, ignore_index=3)
    assert jnp.allclose(loss_ig, ref_ig, rtol=1e-5, atol=1e-5), (loss_ig, ref_ig)

    # Case 3: multi time-block grid with a T % block_t tail + the 2-core split
    # with a phantom (clamped, fully masked) block (3 blocks over 2 "cores").
    T2 = 20
    logits2 = jax.random.normal(k3, (T2, B, C), dtype=jnp.float32)
    log_probs2 = jax.nn.log_softmax(logits2, axis=-1)
    target2 = jax.random.randint(k4, (B, T2), 0, C, dtype=jnp.int32)

    loss2 = jax.block_until_ready(custom_nll_loss(log_probs2, target2, block_t=8))
    ref2 = _reference_loss(log_probs2, target2)
    assert jnp.allclose(loss2, ref2, rtol=1e-5, atol=1e-5), (loss2, ref2)

    loss2_ig = jax.block_until_ready(
        custom_nll_loss(log_probs2, target2, ignore_index=3, block_t=8))
    ref2_ig = _reference_loss(log_probs2, target2, ignore_index=3)
    assert jnp.allclose(loss2_ig, ref2_ig, rtol=1e-5, atol=1e-5), (loss2_ig, ref2_ig)

    # Case 4: C-axis tiling path (2 class chunks) + exact 2-core split.
    T3, B3, C3 = 16, 8, 256
    logits3 = jax.random.normal(k5, (T3, B3, C3), dtype=jnp.float32)
    log_probs3 = jax.nn.log_softmax(logits3, axis=-1)
    target3 = jax.random.randint(k6, (B3, T3), 0, C3, dtype=jnp.int32)

    loss3 = jax.block_until_ready(
        custom_nll_loss(log_probs3, target3, block_t=8, block_c=128))
    ref3 = _reference_loss(log_probs3, target3)
    assert jnp.allclose(loss3, ref3, rtol=1e-5, atol=1e-5), (loss3, ref3)

    loss3_ig = jax.block_until_ready(
        custom_nll_loss(log_probs3, target3, ignore_index=3, block_t=8, block_c=128))
    ref3_ig = _reference_loss(log_probs3, target3, ignore_index=3)
    assert jnp.allclose(loss3_ig, ref3_ig, rtol=1e-5, atol=1e-5), (loss3_ig, ref3_ig)

    # Case 5: bf16 streaming (upcast to f32 inside the kernel).
    lp_bf16 = log_probs.astype(jnp.bfloat16)
    loss_bf16 = jax.block_until_ready(custom_nll_loss(lp_bf16, target))
    ref_bf16 = _reference_loss(lp_bf16.astype(jnp.float32), target)
    assert jnp.allclose(loss_bf16, ref_bf16, rtol=1e-3, atol=1e-3), (loss_bf16, ref_bf16)

    print("KERNEL_OK")
</pallas_src>

<mosaic_0001>
module attributes {stable_mosaic.version = 11 : i64} {
  func.func @_nll_kernel(%arg0: i32, %arg1: i32, %arg2: i32, %arg3: memref<8x4x32xf32, #tpu.memory_space<vmem>>, %arg4: memref<8x4xi32, #tpu.memory_space<vmem>>, %arg5: memref<1x8x128xf32, #tpu.memory_space<vmem>>, %arg6: memref<8x4xf32, #tpu.memory_space<vmem>>) attributes {dimension_semantics = [#tpu.dimension_semantics<parallel>, #tpu.dimension_semantics<arbitrary>, #tpu.dimension_semantics<arbitrary>], iteration_bounds = array<i64: 1, 1, 1>, scalar_prefetch = 0 : i64, scratch_operands = 1 : i64, tpu.core_type = #tpu.core_type<tc>, window_params = [{transform_indices = @transform_0, window_bounds = array<i64: 8, 4, 32>}, {transform_indices = @transform_1, window_bounds = array<i64: 8, 4>}, {transform_indices = @transform_2, window_bounds = array<i64: 1, 8, 128>}]} {
    %c0_i32 = arith.constant 0 : i32
    %0 = arith.cmpi eq, %arg1, %c0_i32 : i32
    %c0_i32_0 = arith.constant 0 : i32
    %1 = arith.cmpi eq, %arg2, %c0_i32_0 : i32
    %2 = arith.andi %0, %1 : i1
    %3 = arith.extui %2 : i1 to i32
    %c0_i32_1 = arith.constant 0 : i32
    %4 = arith.cmpi ne, %3, %c0_i32_1 : i32
    scf.if %4 {
      %cst_15 = arith.constant 0.000000e+00 : f32
      %27 = vector.broadcast %cst_15 : f32 to vector<1x8x128xf32>
      %c0_16 = arith.constant 0 : index
      %c0_17 = arith.constant 0 : index
      %c0_18 = arith.constant 0 : index
      %28 = vector.load %arg5[%c0_16, %c0_17, %c0_18] : memref<1x8x128xf32, #tpu.memory_space<vmem>>, vector<1x8x128xf32>
      tpu.vector_store %arg5[%c0_16, %c0_17, %c0_18], %27 {strides = array<i32>} : memref<1x8x128xf32, #tpu.memory_space<vmem>>, vector<1x8x128xf32>,
    } else {
    }
    %c0_i32_2 = arith.constant 0 : i32
    %5 = arith.cmpi eq, %arg2, %c0_i32_2 : i32
    %6 = arith.extui %5 : i1 to i32
    %c0_i32_3 = arith.constant 0 : i32
    %7 = arith.cmpi ne, %6, %c0_i32_3 : i32
    scf.if %7 {
      %cst_15 = arith.constant 0.000000e+00 : f32
      %27 = vector.broadcast %cst_15 : f32 to vector<8x4xf32>
      %c0_16 = arith.constant 0 : index
      %c0_17 = arith.constant 0 : index
      %28 = vector.load %arg6[%c0_16, %c0_17] : memref<8x4xf32, #tpu.memory_space<vmem>>, vector<8x4xf32>
      tpu.vector_store %arg6[%c0_16, %c0_17], %27 {strides = array<i32>} : memref<8x4xf32, #tpu.memory_space<vmem>>, vector<8x4xf32>,
    } else {
    }
    %c0 = arith.constant 0 : index
    %c0_4 = arith.constant 0 : index
    %c0_5 = arith.constant 0 : index
    %8 = vector.load %arg3[%c0, %c0_4, %c0_5] : memref<8x4x32xf32, #tpu.memory_space<vmem>>, vector<8x4x32xf32>
    %c0_6 = arith.constant 0 : index
    %c0_7 = arith.constant 0 : index
    %9 = vector.load %arg4[%c0_6, %c0_7] : memref<8x4xi32, #tpu.memory_space<vmem>>, vector<8x4xi32>
    %c32_i32 = arith.constant 32 : i32
    %10 = arith.muli %arg2, %c32_i32 : i32
    %11 = tpu.iota {dimensions = array<i32: 2>} : vector<1x1x32xi32>
    %12 = vector.broadcast %10 : i32 to vector<1x1x32xi32>
    %13 = arith.addi %12, %11 : vector<1x1x32xi32>
    %14 = vector.shape_cast %9 : vector<8x4xi32> to vector<8x4x1xi32>
    %15 = vector.broadcast %13 : vector<1x1x32xi32> to vector<8x4x32xi32>
    %16 = vector.broadcast %14 : vector<8x4x1xi32> to vector<8x4x32xi32>
    %17 = arith.cmpi eq, %15, %16 : vector<8x4x32xi32>
    %c0_8 = arith.constant 0 : index
    %c0_9 = arith.constant 0 : index
    %18 = vector.load %arg6[%c0_8, %c0_9] : memref<8x4xf32, #tpu.memory_space<vmem>>, vector<8x4xf32>
    %cst = arith.constant 0.000000e+00 : f32
    %19 = vector.broadcast %cst : f32 to vector<8x4x32xf32>
    %20 = arith.select %17, %8, %19 : vector<8x4x32xi1>, vector<8x4x32xf32>
    %cst_10 = arith.constant dense<0.000000e+00> : vector<8x4xf32>
    %21 = vector.multi_reduction <add>, %20, %cst_10 [2] : vector<8x4x32xf32> to vector<8x4xf32>
    %22 = arith.addf %18, %21 : vector<8x4xf32>
    %c0_11 = arith.constant 0 : index
    %c0_12 = arith.constant 0 : index
    %23 = vector.load %arg6[%c0_11, %c0_12] : memref<8x4xf32, #tpu.memory_space<vmem>>, vector<8x4xf32>
    tpu.vector_store %arg6[%c0_11, %c0_12], %22 {strides = array<i32>} : memref<8x4xf32, #tpu.memory_space<vmem>>, vector<8x4xf32>,
    %c0_i32_13 = arith.constant 0 : i32
    %24 = arith.cmpi eq, %arg2, %c0_i32_13 : i32
    %25 = arith.extui %24 : i1 to i32
    %c0_i32_14 = arith.constant 0 : i32
    %26 = arith.cmpi ne, %25, %c0_i32_14 : i32
    scf.if %26 {
      %c1_i32 = arith.constant 1 : i32
      %27 = arith.muli %arg0, %c1_i32 : i32
      %28 = arith.addi %27, %arg1 : i32
      %c8_i32 = arith.constant 8 : i32
      %29 = arith.muli %28, %c8_i32 : i32
      %30 = tpu.iota {dimensions = array<i32: 0>} : vector<8x1xi32>
      %31 = vector.broadcast %29 : i32 to vector<8x1xi32>
      %32 = arith.addi %31, %30 : vector<8x1xi32>
      %c8_i32_15 = arith.constant 8 : i32
      %33 = vector.broadcast %c8_i32_15 : i32 to vector<8x1xi32>
      %34 = arith.cmpi slt, %32, %33 : vector<8x1xi32>
      %c0_16 = arith.constant 0 : index
      %c0_17 = arith.constant 0 : index
      %35 = vector.load %arg6[%c0_16, %c0_17] : memref<8x4xf32, #tpu.memory_space<vmem>>, vector<8x4xf32>
      %cst_18 = arith.constant 0.000000e+00 : f32
      %36 = vector.broadcast %cst_18 : f32 to vector<8x4xf32>
      %37 = arith.subf %36, %35 : vector<8x4xf32>
      %cst_19 = arith.constant 0.000000e+00 : f32
      %38 = vector.shape_cast %34 : vector<8x1xi1> to vector<8x1xi1>
      %39 = vector.broadcast %38 : vector<8x1xi1> to vector<8x4xi1>
      %40 = vector.broadcast %cst_19 : f32 to vector<8x4xf32>
      %41 = arith.select %39, %37, %40 : vector<8x4xi1>, vector<8x4xf32>
      %42 = vector.shape_cast %41 : vector<8x4xf32> to vector<1x8x4xf32>
      %cst_20 = arith.constant dense<0.000000e+00> : vector<1xf32>
      %43 = vector.multi_reduction <add>, %42, %cst_20 [1, 2] : vector<1x8x4xf32> to vector<1xf32>
      %44 = vector.shape_cast %43 : vector<1xf32> to vector<1x1x1xf32>
      %45 = vector.extract %44[0, 0, 0] : f32 from vector<1x1x1xf32>
      %c0_21 = arith.constant 0 : index
      %c0_22 = arith.constant 0 : index
      %c0_23 = arith.constant 0 : index
      %46 = vector.load %arg5[%c0_21, %c0_22, %c0_23] : memref<1x8x128xf32, #tpu.memory_space<vmem>>, vector<1x8x128xf32>
      %47 = vector.broadcast %45 : f32 to vector<1x8x128xf32>
      %48 = arith.addf %46, %47 : vector<1x8x128xf32>
      %c0_24 = arith.constant 0 : index
      %c0_25 = arith.constant 0 : index
      %c0_26 = arith.constant 0 : index
      %49 = vector.load %arg5[%c0_24, %c0_25, %c0_26] : memref<1x8x128xf32, #tpu.memory_space<vmem>>, vector<1x8x128xf32>
      tpu.vector_store %arg5[%c0_24, %c0_25, %c0_26], %48 {strides = array<i32>} : memref<1x8x128xf32, #tpu.memory_space<vmem>>, vector<1x8x128xf32>,
    } else {
    }
    return
  }
  func.func @transform_0(%arg0: i32, %arg1: i32, %arg2: i32) -> (i32, i32, i32) {
    %c1_i32 = arith.constant 1 : i32
    %0 = arith.muli %arg0, %c1_i32 : i32
    %1 = arith.addi %0, %arg1 : i32
    %c0_i32 = arith.constant 0 : i32
    %2 = arith.minsi %1, %c0_i32 : i32
    %c0_i32_0 = arith.constant 0 : i32
    %c0_i32_1 = arith.constant 0 : i32
    return %2, %c0_i32_0, %arg2 : i32, i32, i32
  }
  func.func @transform_1(%arg0: i32, %arg1: i32, %arg2: i32) -> (i32, i32) {
    %c1_i32 = arith.constant 1 : i32
    %0 = arith.muli %arg0, %c1_i32 : i32
    %1 = arith.addi %0, %arg1 : i32
    %c0_i32 = arith.constant 0 : i32
    %2 = arith.minsi %1, %c0_i32 : i32
    %c0_i32_0 = arith.constant 0 : i32
    %c0_i32_1 = arith.constant 0 : i32
    return %2, %c0_i32_0 : i32, i32
  }
  func.func @transform_2(%arg0: i32, %arg1: i32, %arg2: i32) -> (i32, i32, i32) {
    %c0_i32 = arith.constant 0 : i32
    %c0_i32_0 = arith.constant 0 : i32
    %c0_i32_1 = arith.constant 0 : i32
    return %arg0, %c0_i32, %c0_i32_0 : i32, i32, i32
  }
}

</mosaic_0001>

<llo_original>
// kernel: tpu_custom_call.1
$region0: #{tpu_custom_call.1}
  #allocation0 [shape = 'u32[]', space=smem, size = 0x4, offset = 0x4, fixed_abs, tag = 'smem constant byte address 0x4 - core index']
  #allocation1 [shape = 'u32[72,128]{1,0:T(1,128)}', space=vmem, size = 0x9000, scoped, tag = 'internal scratch']
  #allocation2 [shape = 'f32[8,4]{1,0:T(8,128)}', space=vmem, size = 0x1000, scoped, tag = 'scratch operand']
  %s0 = inlined_call_operand.hbm [shape: f32[8,4,32], index: 0, kind: input, shape index: {}]
  %s1 = inlined_call_operand.vmem [shape: s32[8,4], index: 1, kind: input, shape index: {}]
  %s2 = inlined_call_operand.hbm [shape: f32[1,8,128], index: 2, kind: output, shape index: {}]
  %s3 = sld [smem:[#allocation0]]
  $region34: #{tpu_custom_call.1} parent=0
    _
  %s5 = ssub.s32 1, %s3
  %s6 = scalar_select 0, %s5, %s3
  $region1: #{tpu_custom_call.1} parent=0
    #allocation3 [shape = 'u8[16384]{0}', space=vmem, size = 0x4000, scoped, tag = 'input window, operand 0, single buffered']
    #allocation4 [shape = 's32[1]{0}', space=sflag, size = 0x4, scoped, tag = 'scoped memory for tpu_custom_call.1']
    #allocation5 [shape = 's32[1]{0}', space=sflag, size = 0x4, scoped, tag = 'scoped memory for tpu_custom_call.1']
    #allocation6 [shape = 'u8[4096]{0}', space=vmem, size = 0x1000, scoped, tag = 'output window, operand 0, single buffered']
    %7 = vsyncpa [#allocation4], 0
    %8 = vsyncpa [#allocation5], 0
    // Predicated region
    $region2: #{tpu_custom_call.1} parent=1 // pred_check
      _
    $region3: #{tpu_custom_call.1} parent=1 // pred_check_branch
      %10 = sbr.rel (0) target = $region5
    $region4: #{tpu_custom_call.1} parent=1 // pred_region
      %s11 = sadd.s32 0, 0
      %p12 = scmp.lt.s32.totalorder %s11, 0
      %s13 = scalar_select %p12, %s11, 0
      %s14 = smul.u32 8, %s13
      %16 = vsyncadd [#allocation4], 0
      %s17 = smul.addr %s14, 4
      %s18 = scalar_lea.hbm %s0, %s17
      %s19 = sshll.u32 %s18, 4
      %s20 = int_to_ptr.hbm [resolvable:$true] %s19
      %s21 = sshll.u32 [#allocation3], 4
      %s22 = int_to_ptr.vmem [resolvable:$true] %s21
      %27 = dma.hbm_to_vmem [thread:$0]  %s20, 512, %s22, [#allocation4], 64, 64, 4
    $region5: #{tpu_custom_call.1} parent=1 // pred_fallthru
      _
    // Predicated region
    $region6: #{tpu_custom_call.1} parent=1 // pred_check
      _
    $region7: #{tpu_custom_call.1} parent=1 // pred_check_branch
      %29 = sbr.rel (0) target = $region9
    $region8: #{tpu_custom_call.1} parent=1 // pred_region
      %s30 = sadd.s32 0, 0
      %p31 = scmp.lt.s32.totalorder %s30, 0
      %s32 = scalar_select %p31, %s30, 0
      %p33 = scmp.lt.s32.totalorder %s32, 0
      %s34 = scalar_select %p33, %s32, 0
      %s35 = smul.addr %s34, 8
      %s36 = scalar_lea.vmem %s1, %s35
      %s37 = sadd.s32 0, 0
      %p38 = scmp.lt.s32.totalorder %s37, 0
      %s39 = scalar_select %p38, %s37, 0
    $region9: #{tpu_custom_call.1} parent=1 // pred_fallthru
      _
    // Predicated region
    $region10: #{tpu_custom_call.1} parent=1 // pred_check
      _
    $region11: #{tpu_custom_call.1} parent=1 // pred_check_branch
      %41 = sbr.rel (0) target = $region13
    $region12: #{tpu_custom_call.1} parent=1 // pred_region
      %43 = dma.done [#allocation4], 512
    $region13: #{tpu_custom_call.1} parent=1 // pred_fallthru
      _
    %s44 = sadd.s32 0, 0
    %p45 = scmp.lt.s32.totalorder %s44, 0
    %s46 = scalar_select %p45, %s44, 0
    %p47 = scmp.lt.s32.totalorder %s46, 0
    %s48 = scalar_select %p47, %s46, 0
    %s49 = smul.addr %s48, 8
    %s50 = scalar_lea.vmem %s1, %s49
    %s51 = sadd.s32 0, 0
    %p52 = scmp.lt.s32.totalorder %s51, 0
    %s53 = scalar_select %p52, %s51, 0
    %s54 = smul.u32 8, %s53
    %s55 = sadd.s32 0, 0
    %p56 = scmp.lt.s32.totalorder %s55, 0
    %s57 = scalar_select %p56, %s55, 0
    %p58 = scmp.lt.s32.totalorder %s57, 0
    %s59 = scalar_select %p58, %s57, 0
    %s60 = smul.addr %s59, 8
    %s61 = scalar_lea.vmem %s1, %s60
    %s62 = sadd.s32 0, 0
    %p63 = scmp.lt.s32.totalorder %s62, 0
    %s64 = scalar_select %p63, %s62, 0
    %p65 = scmp.eq.s32.totalorder 0, 0
    %p66 = scmp.eq.s32.totalorder 0, 0
    %p67 = pnand %p65, %p66
    %p68 = pneg %p67
    // Predicated region
    $region14: #{tpu_custom_call.1} parent=1 // pred_check
      _
    $region15: #{tpu_custom_call.1} parent=1 // pred_check_branch
      %70 = sbr.rel (%p67) target = $region17
    $region16: #{tpu_custom_call.1} parent=1 // pred_region
      %71 = vst [vmem:[#allocation6] sm:$0xff] 0.0
    $region17: #{tpu_custom_call.1} parent=1 // pred_fallthru
      _
    // Predicated region
    $region18: #{tpu_custom_call.1} parent=1 // pred_check
      %p72 = pneg %p66
    $region19: #{tpu_custom_call.1} parent=1 // pred_check_branch
      %74 = sbr.rel (%p72) target = $region21
    $region20: #{tpu_custom_call.1} parent=1 // pred_region
      %vm75 = vcmask 31744
      %76 = vst.msk [vmem:[#allocation2] sm:$0xff] %vm75, 0.0
    $region21: #{tpu_custom_call.1} parent=1 // pred_fallthru
      _
    %v77 = vld [vmem:[#allocation3] sm:$0xf]
    %v78 = vld [vmem:[#allocation3 + $0x4] sm:$0xf]
    %v79 = vld [vmem:[#allocation3 + $0x8] sm:$0xf]
    %v80 = vld [vmem:[#allocation3 + $0xc] sm:$0xf]
    %v81 = vld [vmem:[#allocation3 + $0x10] sm:$0xf]
    %v82 = vld [vmem:[#allocation3 + $0x14] sm:$0xf]
    %v83 = vld [vmem:[#allocation3 + $0x18] sm:$0xf]
    %v84 = vld [vmem:[#allocation3 + $0x1c] sm:$0xf]
    %v85 = vld [vmem:[%s61] sm:$0xff]
    %s86 = smul.u32 0, 32
    %v87 = vlaneseq
    %v88 = vand.u32 %v87, 127
    %v89 = vstv %s86
    %v90 = vadd.s32 %v89, %v88
    %v91 = vperm.slane %v85, 0
    %v92 = vlaneseq
    %v93 = vshrl.u32 %v92, 7
    %95 = vset.pattern.permute.xlu0 %v93
    %96 = vperm.xlu0 %95, %v91
    %v97 = vpop.permute.xlu0 %96
    %v98 = vperm.slane %v85, 1
    %v99 = vlaneseq
    %v100 = vshrl.u32 %v99, 7
    %102 = vset.pattern.permute.xlu0 %v100
    %103 = vperm.xlu0 %102, %v98
    %v104 = vpop.permute.xlu0 %103
    %v105 = vperm.slane %v85, 2
    %v106 = vlaneseq
    %v107 = vshrl.u32 %v106, 7
    %109 = vset.pattern.permute.xlu0 %v107
    %110 = vperm.xlu0 %109, %v105
    %v111 = vpop.permute.xlu0 %110
    %v112 = vperm.slane %v85, 3
    %v113 = vlaneseq
    %v114 = vshrl.u32 %v113, 7
    %116 = vset.pattern.permute.xlu0 %v114
    %117 = vperm.xlu0 %116, %v112
    %v118 = vpop.permute.xlu0 %117
    %v119 = vperm.slane %v85, 4
    %v120 = vlaneseq
    %v121 = vshrl.u32 %v120, 7
    %123 = vset.pattern.permute.xlu0 %v121
    %124 = vperm.xlu0 %123, %v119
    %v125 = vpop.permute.xlu0 %124
    %v126 = vperm.slane %v85, 5
    %v127 = vlaneseq
    %v128 = vshrl.u32 %v127, 7
    %130 = vset.pattern.permute.xlu0 %v128
    %131 = vperm.xlu0 %130, %v126
    %v132 = vpop.permute.xlu0 %131
    %v133 = vperm.slane %v85, 6
    %v134 = vlaneseq
    %v135 = vshrl.u32 %v134, 7
    %137 = vset.pattern.permute.xlu0 %v135
    %138 = vperm.xlu0 %137, %v133
    %v139 = vpop.permute.xlu0 %138
    %v140 = vperm.slane %v85, 7
    %v141 = vlaneseq
    %v142 = vshrl.u32 %v141, 7
    %144 = vset.pattern.permute.xlu0 %v142
    %145 = vperm.xlu0 %144, %v140
    %v146 = vpop.permute.xlu0 %145
    %vm147 = vcmp.eq.s32.totalorder %v90, %v97
    %vm148 = vcmp.eq.s32.totalorder %v90, %v104
    %vm149 = vcmp.eq.s32.totalorder %v90, %v111
    %vm150 = vcmp.eq.s32.totalorder %v90, %v118
    %vm151 = vcmp.eq.s32.totalorder %v90, %v125
    %vm152 = vcmp.eq.s32.totalorder %v90, %v132
    %vm153 = vcmp.eq.s32.totalorder %v90, %v139
    %vm154 = vcmp.eq.s32.totalorder %v90, %v146
    %v155 = vld [vmem:[#allocation2] sm:$0xff]
    %v156 = vsel %vm147, %v77, 0.0
    %v157 = vsel %vm148, %v78, 0.0
    %v158 = vsel %vm149, %v79, 0.0
    %v159 = vsel %vm150, %v80, 0.0
    %v160 = vsel %vm151, %v81, 0.0
    %v161 = vsel %vm152, %v82, 0.0
    %v162 = vsel %vm153, %v83, 0.0
    %v163 = vsel %vm154, %v84, 0.0
    %vm164 = vcmask 257024
    %v165 = vsel %vm164, %v156, 0.0
    %166 = vadd.xlane.f32.xlu0 %v165
    %v167 = vpop.xlane.xlu0 %166
    %v168 = vsel %vm164, %v157, 0.0
    %169 = vadd.xlane.f32.xlu0 %v168
    %v170 = vpop.xlane.xlu0 %169
    %v171 = vsel %vm164, %v158, 0.0
    %172 = vadd.xlane.f32.xlu0 %v171
    %v173 = vpop.xlane.xlu0 %172
    %v174 = vsel %vm164, %v159, 0.0
    %175 = vadd.xlane.f32.xlu0 %v174
    %v176 = vpop.xlane.xlu0 %175
    %v177 = vsel %vm164, %v160, 0.0
    %178 = vadd.xlane.f32.xlu0 %v177
    %v179 = vpop.xlane.xlu0 %178
    %v180 = vsel %vm164, %v161, 0.0
    %181 = vadd.xlane.f32.xlu0 %v180
    %v182 = vpop.xlane.xlu0 %181
    %v183 = vsel %vm164, %v162, 0.0
    %184 = vadd.xlane.f32.xlu0 %v183
    %v185 = vpop.xlane.xlu0 %184
    %v186 = vsel %vm164, %v163, 0.0
    %187 = vadd.xlane.f32.xlu0 %v186
    %v188 = vpop.xlane.xlu0 %187
    %v197 = vperm.slane %v167, %v88
    %v198 = vperm.slane %v170, %v88
    %v199 = vperm.slane %v173, %v88
    %v200 = vperm.slane %v176, %v88
    %v201 = vperm.slane %v179, %v88
    %v202 = vperm.slane %v182, %v88
    %v203 = vperm.slane %v185, %v88
    %v204 = vperm.slane %v188, %v88
    %vm205 = vcmask 1041409
    %v206 = vsel %vm205, %v198, %v197
    %vm207 = vcmask 1042434
    %v208 = vsel %vm207, %v199, %v206
    %vm209 = vcmask 1043459
    %v210 = vsel %vm209, %v200, %v208
    %vm211 = vcmask 1044484
    %v212 = vsel %vm211, %v201, %v210
    %vm213 = vcmask 1045509
    %v214 = vsel %vm213, %v202, %v212
    %vm215 = vcmask 1046534
    %v216 = vsel %vm215, %v203, %v214
    %vm217 = vcmask 1047559
    %v218 = vsel %vm217, %v204, %v216
    %v220 = vadd.f32 %v155, %v218
    %vm221 = vcmask 31744
    %222 = vst.msk [vmem:[#allocation2] sm:$0xff] %vm221, %v220
    // Predicated region
    $region22: #{tpu_custom_call.1} parent=1 // pred_check
      %p223 = pneg %p66
    $region23: #{tpu_custom_call.1} parent=1 // pred_check_branch
      %225 = sbr.rel (%p223) target = $region25
    $region24: #{tpu_custom_call.1} parent=1 // pred_region
      %s226 = sadd.s32 0, 0
      %s227 = smul.u32 %s226, 8
      %v228 = vlaneseq
      %v229 = vshrl.u32 %v228, 7
      %v230 = vstv %s227
      %v231 = vadd.s32 %v230, %v229
      %vm232 = vcmp.lt.s32.totalorder %v231, 8
      %v233 = vld [vmem:[#allocation2] sm:$0xff]
      %v234 = vsub.f32 0.0, %v233
      %v235 = vsel %vm232, 1, 0
      %vm236 = vcmp.eq.s32.totalorder %v235, 1
      %v237 = vsel %vm236, %v234, 0.0
      %v238 = vsel %vm221, %v237, 0.0
      %239 = vadd.xlane.f32.xlu0 %v238
      %v240 = vpop.xlane.xlu0 %239
      %v241 = vrot.slane %v240, 4
      %v242 = vadd.f32 %v240, %v241
      %v243 = vrot.slane %v242, 2
      %v244 = vadd.f32 %v242, %v243
      %v245 = vrot.slane %v244, 1
      %v246 = vadd.f32 %v244, %v245
      %s247 = vtos %v246
      %v248 = vld [vmem:[#allocation6] sm:$0xff]
      %v249 = vstv %s247
      %v250 = vadd.f32 %v248, %v249
      %251 = vst [vmem:[#allocation6] sm:$0xff] %v250
    $region25: #{tpu_custom_call.1} parent=1 // pred_fallthru
      _
    // Predicated region
    $region26: #{tpu_custom_call.1} parent=1 // pred_check
      _
    $region27: #{tpu_custom_call.1} parent=1 // pred_check_branch
      %253 = sbr.rel (0) target = $region29
    $region28: #{tpu_custom_call.1} parent=1 // pred_region
      %255 = vsyncadd [#allocation5], 0
      %s257 = sshll.u32 [#allocation6], 4
      %s258 = int_to_ptr.vmem [resolvable:$true] %s257
      %s259 = sshll.u32 %s2, 4
      %s260 = int_to_ptr.hbm [resolvable:$true] %s259
      %262 = dma.vmem_to_hbm [thread:$0]  %s258, 128, %s260, [#allocation5]
    $region29: #{tpu_custom_call.1} parent=1 // pred_fallthru
      _
    // Predicated region
    $region30: #{tpu_custom_call.1} parent=1 // pred_check
      _
    $region31: #{tpu_custom_call.1} parent=1 // pred_check_branch
      %264 = sbr.rel (0) target = $region33
    $region32: #{tpu_custom_call.1} parent=1 // pred_region
      %266 = dma.done [#allocation5], 128
    $region33: #{tpu_custom_call.1} parent=1 // pred_fallthru
      _
    %267 = vsyncpa [#allocation4], 1
    %268 = vsyncpa [#allocation5], 1

</llo_original>
